<compile_context>
chip_gen: v7x
topology: tpu7x:2x2x1
jax: 0.10.0
libtpu: 0.0.40
codegen_flags: <defaults>
</compile_context>

<pallas_src>
import functools

import jax
import jax.numpy as jnp
from jax.experimental import pallas as pl
from jax.experimental.pallas import tpu as pltpu


def _round_up(x, m):
    return ((x + m - 1) // m) * m


def _make_logprob_kernel(tile_v, vocab_size, mask_vocab):
    def kernel(h_ref, w_ref, tgt_ref, out_ref, m_sc, l_sc, t_sc):
        # h_ref:   (TR, H)   bf16 hidden-state tile
        # w_ref:   (H, TV)   bf16 LM-head weight tile (vocab slice)
        # tgt_ref: (TR, 1)   int32 target token ids
        # out_ref: (TR, 128) f32 log-prob of target, broadcast across lanes
        # m_sc/l_sc/t_sc: (TR, 1) f32 running max / sum-exp / target-logit
        k = pl.program_id(1)

        @pl.when(k == 0)
        def _init():
            m_sc[...] = jnp.full_like(m_sc, -jnp.inf)
            l_sc[...] = jnp.zeros_like(l_sc)
            t_sc[...] = jnp.zeros_like(t_sc)

        # MXU: bf16 x bf16 -> f32 accumulation.
        logits = jnp.dot(h_ref[...], w_ref[...],
                         preferred_element_type=jnp.float32)          # (TR, TV)
        ids = jax.lax.broadcasted_iota(jnp.int32, logits.shape, 1) + k * tile_v
        if mask_vocab:
            # Edge vocab tile: columns >= V hold garbage -> exclude from LSE.
            logits = jnp.where(ids < vocab_size, logits, -jnp.inf)

        # Target-logit gather via select+reduce (target lives in exactly one
        # vocab tile; other tiles contribute 0).
        t_sc[...] += jnp.sum(jnp.where(ids == tgt_ref[...], logits, 0.0),
                             axis=-1, keepdims=True)

        # Online log-sum-exp update.
        m_prev = m_sc[...]
        m_new = jnp.maximum(m_prev, jnp.max(logits, axis=-1, keepdims=True))
        alpha = jnp.exp(m_prev - m_new)
        l_sc[...] = alpha * l_sc[...] + jnp.sum(jnp.exp(logits - m_new),
                                                axis=-1, keepdims=True)
        m_sc[...] = m_new

        @pl.when(k == pl.num_programs(1) - 1)
        def _finalize():
            logp = t_sc[...] - (m_sc[...] + jnp.log(l_sc[...]))       # (TR, 1)
            # Lane-dense (TR, 128) store: broadcast the per-row scalar across
            # lanes so the writeback is a dense, unmasked vector store.
            out_ref[...] = jnp.broadcast_to(logp, out_ref.shape)

    return kernel


def log_probs_from_hidden(hidden, w_head, targets, *, tile_rows=256, tile_v=1024):
    """Fused LM-head + log_softmax + target gather.

    hidden:  [rows, H]   (cast to bf16 if not already)
    w_head:  [H, V]      (cast to bf16 if not already)
    targets: [rows]      int
    returns: [rows]      f32 log p(target)
    """
    rows, H = hidden.shape
    H2, V = w_head.shape
    assert H2 == H

    if hidden.dtype != jnp.bfloat16:
        hidden = hidden.astype(jnp.bfloat16)
    if w_head.dtype != jnp.bfloat16:
        w_head = w_head.astype(jnp.bfloat16)
    targets = targets.astype(jnp.int32).reshape(rows, 1)

    # Row tile: large for MXU occupancy, multiple of 8, clamped to problem.
    tr = max(8, min(int(tile_rows), _round_up(rows, 8)))
    tr = _round_up(tr, 8)
    # Vocab tile: multiple of 128 (or full V); edge tile masked in-kernel.
    tv = min(int(tile_v), V)
    if tv < V:
        tv = max(128, (tv // 128) * 128)
        if tv >= V:
            tv = V
    mask_vocab = (V % tv) != 0

    grid = (pl.cdiv(rows, tr), pl.cdiv(V, tv))

    # VMEM budget (double-buffered inputs/outputs + logits temp + scratch),
    # kept under 64 MiB so it is safe on v5e/v6e (128 MiB) and v7x (64 MiB).
    vmem_need = (2 * tr * H * 2        # hidden tiles (bf16)
                 + 2 * H * tv * 2      # weight tiles (bf16)
                 + 2 * tr * 128 * 4    # output tiles (f32)
                 + 2 * tr * 4          # target tiles (int32)
                 + tr * tv * 4         # logits temporary
                 + 3 * tr * 4)         # scratch
    vmem_limit = int(min(max(2 * vmem_need, 32 * 1024 * 1024), 64 * 1024 * 1024))

    cost = pl.CostEstimate(
        flops=2 * rows * H * V,
        transcendentals=rows * V,
        bytes_accessed=(rows * H * 2            # hidden (bf16)
                        + grid[0] * H * V * 2   # weight re-streamed per row tile
                        + rows * 4              # targets
                        + rows * 128 * 4),      # output
    )

    out = pl.pallas_call(
        _make_logprob_kernel(tv, V, mask_vocab),
        out_shape=jax.ShapeDtypeStruct((rows, 128), jnp.float32),
        grid_spec=pltpu.PrefetchScalarGridSpec(
            num_scalar_prefetch=0,
            grid=grid,
            in_specs=[
                pl.BlockSpec((tr, H), lambda i, k: (i, 0)),   # hidden rows
                pl.BlockSpec((H, tv), lambda i, k: (0, k)),   # weight vocab slice
                pl.BlockSpec((tr, 1), lambda i, k: (i, 0)),   # targets
            ],
            out_specs=pl.BlockSpec((tr, 128), lambda i, k: (i, 0)),
            scratch_shapes=[pltpu.VMEM((tr, 1), jnp.float32)] * 3,
        ),
        compiler_params=pltpu.CompilerParams(
            dimension_semantics=("parallel", "arbitrary"),
            vmem_limit_bytes=vmem_limit,
        ),
        cost_estimate=cost,
    )(hidden, w_head, targets)
    return out[:, 0]


class ActorPallas:
    """JAX/Pallas port of openrlhf.models.actor.Actor with a synthetic causal LM."""

    def __init__(self, vocab_size, hidden_size, key):
        k1, k2 = jax.random.split(key)
        # Deterministic synthetic parameters (no checkpoint load).
        self.embed = (jax.random.normal(k1, (vocab_size, hidden_size), jnp.float32)
                      * 0.02)
        self.w_head = (jax.random.normal(k2, (hidden_size, vocab_size), jnp.float32)
                       * 0.02)
        self.w_head_bf16 = self.w_head.astype(jnp.bfloat16)   # cast once

    def forward(self, sequences, num_actions=None, attention_mask=None,
                return_output=False, tile_rows=256, tile_v=1024):
        # TODO(synk): the transformer body of the wrapped HF causal LM is not
        # replicated; the synthetic LM is embedding + LM head (attention_mask unused).
        B, T = sequences.shape
        hidden = self.embed[sequences]                         # (B, T, H) glue
        if return_output:
            logits = jnp.einsum('bth,hv->btv', hidden, self.w_head)
            return {'logits': logits}
        h = hidden[:, :-1, :].reshape(B * (T - 1), -1).astype(jnp.bfloat16)
        tgt = sequences[:, 1:].reshape(B * (T - 1))
        logp = log_probs_from_hidden(h, self.w_head_bf16, tgt,
                                     tile_rows=tile_rows, tile_v=tile_v)
        logp = logp.reshape(B, T - 1)
        return logp[:, -num_actions:]


def _reference_forward(actor, sequences, num_actions):
    """Pure-JAX reference (same bf16-quantized inputs, f32 math)."""
    hidden = actor.embed[sequences].astype(jnp.bfloat16).astype(jnp.float32)
    w = actor.w_head_bf16.astype(jnp.float32)
    logits = jnp.einsum('bth,hv->btv', hidden[:, :-1, :], w)
    logp_all = jax.nn.log_softmax(logits, axis=-1)
    tgt = sequences[:, 1:]
    logp = jnp.take_along_axis(logp_all, tgt[..., None], axis=-1)[..., 0]
    return logp[:, -num_actions:]


if __name__ == "__main__":
    # Small shapes, chosen to exercise: multiple row tiles (with a ragged edge
    # row block), multiple vocab tiles (online LSE), and the vocab-mask path
    # (V not a multiple of the vocab tile).
    B, T, H, V = 2, 8, 32, 384
    num_actions = 4

    key = jax.random.PRNGKey(0)
    k_model, k_seq = jax.random.split(key)

    actor = ActorPallas(vocab_size=V, hidden_size=H, key=k_model)
    sequences = jax.random.randint(k_seq, (B, T), 0, V, dtype=jnp.int32)

    out = actor.forward(sequences, num_actions=num_actions,
                        tile_rows=8, tile_v=256)
    out = jax.block_until_ready(out)

    ref = _reference_forward(actor, sequences, num_actions)
    assert out.shape == (B, num_actions)
    assert jnp.allclose(out, ref, rtol=2e-3, atol=2e-3), (
        f"max abs err {jnp.max(jnp.abs(out - ref))}")

    print("KERNEL_OK")
</pallas_src>

<mosaic_0001>
module attributes {stable_mosaic.version = 11 : i64} {
  func.func @kernel(%arg0: i32, %arg1: i32, %arg2: memref<8x32xbf16, #tpu.memory_space<vmem>>, %arg3: memref<32x256xbf16, #tpu.memory_space<vmem>>, %arg4: memref<8x1xi32, #tpu.memory_space<vmem>>, %arg5: memref<8x128xf32, #tpu.memory_space<vmem>>, %arg6: memref<8x1xf32, #tpu.memory_space<vmem>>, %arg7: memref<8x1xf32, #tpu.memory_space<vmem>>, %arg8: memref<8x1xf32, #tpu.memory_space<vmem>>) attributes {dimension_semantics = [#tpu.dimension_semantics<parallel>, #tpu.dimension_semantics<arbitrary>], iteration_bounds = array<i64: 2, 2>, scalar_prefetch = 0 : i64, scratch_operands = 3 : i64, tpu.core_type = #tpu.core_type<tc>, window_params = [{transform_indices = @transform_0, window_bounds = array<i64: 8, 32>}, {transform_indices = @transform_1, window_bounds = array<i64: 32, 256>}, {transform_indices = @transform_2, window_bounds = array<i64: 8, 1>}, {transform_indices = @transform_3, window_bounds = array<i64: 8, 128>}]} {
    %c0_i32 = arith.constant 0 : i32
    %0 = arith.cmpi eq, %arg1, %c0_i32 : i32
    %1 = arith.extui %0 : i1 to i32
    %c0_i32_0 = arith.constant 0 : i32
    %2 = arith.cmpi ne, %1, %c0_i32_0 : i32
    scf.if %2 {
      %cst_24 = arith.constant 0xFF800000 : f32
      %43 = vector.broadcast %cst_24 : f32 to vector<8x1xf32>
      %c0_25 = arith.constant 0 : index
      %c0_26 = arith.constant 0 : index
      %44 = vector.load %arg6[%c0_25, %c0_26] : memref<8x1xf32, #tpu.memory_space<vmem>>, vector<8x1xf32>
      tpu.vector_store %arg6[%c0_25, %c0_26], %43 {strides = array<i32>} : memref<8x1xf32, #tpu.memory_space<vmem>>, vector<8x1xf32>,
      %cst_27 = arith.constant 0.000000e+00 : f32
      %45 = vector.broadcast %cst_27 : f32 to vector<8x1xf32>
      %c0_28 = arith.constant 0 : index
      %c0_29 = arith.constant 0 : index
      %46 = vector.load %arg7[%c0_28, %c0_29] : memref<8x1xf32, #tpu.memory_space<vmem>>, vector<8x1xf32>
      tpu.vector_store %arg7[%c0_28, %c0_29], %45 {strides = array<i32>} : memref<8x1xf32, #tpu.memory_space<vmem>>, vector<8x1xf32>,
      %cst_30 = arith.constant 0.000000e+00 : f32
      %47 = vector.broadcast %cst_30 : f32 to vector<8x1xf32>
      %c0_31 = arith.constant 0 : index
      %c0_32 = arith.constant 0 : index
      %48 = vector.load %arg8[%c0_31, %c0_32] : memref<8x1xf32, #tpu.memory_space<vmem>>, vector<8x1xf32>
      tpu.vector_store %arg8[%c0_31, %c0_32], %47 {strides = array<i32>} : memref<8x1xf32, #tpu.memory_space<vmem>>, vector<8x1xf32>,
    } else {
    }
    %c0 = arith.constant 0 : index
    %c0_1 = arith.constant 0 : index
    %3 = vector.load %arg2[%c0, %c0_1] : memref<8x32xbf16, #tpu.memory_space<vmem>>, vector<8x32xbf16>
    %c0_2 = arith.constant 0 : index
    %c0_3 = arith.constant 0 : index
    %4 = vector.load %arg3[%c0_2, %c0_3] : memref<32x256xbf16, #tpu.memory_space<vmem>>, vector<32x256xbf16>
    %cst = arith.constant dense<0.000000e+00> : vector<8x256xf32>
    %5 = tpu.matmul %3, %4, %cst {dimension_numbers = #tpu.dot_dimension_numbers<[1], [0], [0], [1], [0, 0, 1, 1], [], []>} : vector<8x32xbf16>, vector<32x256xbf16>, vector<8x256xf32> -> vector<8x256xf32>
    %6 = tpu.iota {dimensions = array<i32: 1>} : vector<8x256xi32>
    %c256_i32 = arith.constant 256 : i32
    %7 = arith.muli %arg1, %c256_i32 : i32
    %8 = vector.broadcast %7 : i32 to vector<8x256xi32>
    %9 = arith.addi %6, %8 : vector<8x256xi32>
    %c384_i32 = arith.constant 384 : i32
    %10 = vector.broadcast %c384_i32 : i32 to vector<8x256xi32>
    %11 = arith.cmpi slt, %9, %10 : vector<8x256xi32>
    %cst_4 = arith.constant 0xFF800000 : f32
    %12 = vector.broadcast %cst_4 : f32 to vector<8x256xf32>
    %13 = arith.select %11, %5, %12 : vector<8x256xi1>, vector<8x256xf32>
    %c0_5 = arith.constant 0 : index
    %c0_6 = arith.constant 0 : index
    %14 = vector.load %arg8[%c0_5, %c0_6] : memref<8x1xf32, #tpu.memory_space<vmem>>, vector<8x1xf32>
    %c0_7 = arith.constant 0 : index
    %c0_8 = arith.constant 0 : index
    %15 = vector.load %arg4[%c0_7, %c0_8] : memref<8x1xi32, #tpu.memory_space<vmem>>, vector<8x1xi32>
    %16 = vector.broadcast %15 : vector<8x1xi32> to vector<8x256xi32>
    %17 = arith.cmpi eq, %9, %16 : vector<8x256xi32>
    %cst_9 = arith.constant 0.000000e+00 : f32
    %18 = vector.broadcast %cst_9 : f32 to vector<8x256xf32>
    %19 = arith.select %17, %13, %18 : vector<8x256xi1>, vector<8x256xf32>
    %cst_10 = arith.constant dense<0.000000e+00> : vector<8xf32>
    %20 = vector.multi_reduction <add>, %19, %cst_10 [1] : vector<8x256xf32> to vector<8xf32>
    %21 = vector.shape_cast %20 : vector<8xf32> to vector<8x1xf32>
    %22 = arith.addf %14, %21 : vector<8x1xf32>
    %c0_11 = arith.constant 0 : index
    %c0_12 = arith.constant 0 : index
    %23 = vector.load %arg8[%c0_11, %c0_12] : memref<8x1xf32, #tpu.memory_space<vmem>>, vector<8x1xf32>
    tpu.vector_store %arg8[%c0_11, %c0_12], %22 {strides = array<i32>} : memref<8x1xf32, #tpu.memory_space<vmem>>, vector<8x1xf32>,
    %c0_13 = arith.constant 0 : index
    %c0_14 = arith.constant 0 : index
    %24 = vector.load %arg6[%c0_13, %c0_14] : memref<8x1xf32, #tpu.memory_space<vmem>>, vector<8x1xf32>
    %cst_15 = arith.constant dense<0xFF800000> : vector<8xf32>
    %25 = vector.multi_reduction <maximumf>, %13, %cst_15 [1] : vector<8x256xf32> to vector<8xf32>
    %26 = vector.shape_cast %25 : vector<8xf32> to vector<8x1xf32>
    %27 = arith.maximumf %24, %26 : vector<8x1xf32>
    %28 = arith.subf %24, %27 : vector<8x1xf32>
    %29 = math.exp %28 : vector<8x1xf32>
    %c0_16 = arith.constant 0 : index
    %c0_17 = arith.constant 0 : index
    %30 = vector.load %arg7[%c0_16, %c0_17] : memref<8x1xf32, #tpu.memory_space<vmem>>, vector<8x1xf32>
    %31 = arith.mulf %29, %30 : vector<8x1xf32>
    %32 = vector.broadcast %27 : vector<8x1xf32> to vector<8x256xf32>
    %33 = arith.subf %13, %32 : vector<8x256xf32>
    %34 = math.exp %33 : vector<8x256xf32>
    %cst_18 = arith.constant dense<0.000000e+00> : vector<8xf32>
    %35 = vector.multi_reduction <add>, %34, %cst_18 [1] : vector<8x256xf32> to vector<8xf32>
    %36 = vector.shape_cast %35 : vector<8xf32> to vector<8x1xf32>
    %37 = arith.addf %31, %36 : vector<8x1xf32>
    %c0_19 = arith.constant 0 : index
    %c0_20 = arith.constant 0 : index
    %38 = vector.load %arg7[%c0_19, %c0_20] : memref<8x1xf32, #tpu.memory_space<vmem>>, vector<8x1xf32>
    tpu.vector_store %arg7[%c0_19, %c0_20], %37 {strides = array<i32>} : memref<8x1xf32, #tpu.memory_space<vmem>>, vector<8x1xf32>,
    %c0_21 = arith.constant 0 : index
    %c0_22 = arith.constant 0 : index
    %39 = vector.load %arg6[%c0_21, %c0_22] : memref<8x1xf32, #tpu.memory_space<vmem>>, vector<8x1xf32>
    tpu.vector_store %arg6[%c0_21, %c0_22], %27 {strides = array<i32>} : memref<8x1xf32, #tpu.memory_space<vmem>>, vector<8x1xf32>,
    %c1_i32 = arith.constant 1 : i32
    %40 = arith.cmpi eq, %arg1, %c1_i32 : i32
    %41 = arith.extui %40 : i1 to i32
    %c0_i32_23 = arith.constant 0 : i32
    %42 = arith.cmpi ne, %41, %c0_i32_23 : i32
    scf.if %42 {
      %c0_24 = arith.constant 0 : index
      %c0_25 = arith.constant 0 : index
      %43 = vector.load %arg8[%c0_24, %c0_25] : memref<8x1xf32, #tpu.memory_space<vmem>>, vector<8x1xf32>
      %c0_26 = arith.constant 0 : index
      %c0_27 = arith.constant 0 : index
      %44 = vector.load %arg6[%c0_26, %c0_27] : memref<8x1xf32, #tpu.memory_space<vmem>>, vector<8x1xf32>
      %c0_28 = arith.constant 0 : index
      %c0_29 = arith.constant 0 : index
      %45 = vector.load %arg7[%c0_28, %c0_29] : memref<8x1xf32, #tpu.memory_space<vmem>>, vector<8x1xf32>
      %46 = math.log %45 : vector<8x1xf32>
      %47 = arith.addf %44, %46 : vector<8x1xf32>
      %48 = arith.subf %43, %47 : vector<8x1xf32>
      %49 = vector.shape_cast %48 : vector<8x1xf32> to vector<8x1xf32>
      %50 = vector.broadcast %49 : vector<8x1xf32> to vector<8x128xf32>
      %c0_30 = arith.constant 0 : index
      %c0_31 = arith.constant 0 : index
      %51 = vector.load %arg5[%c0_30, %c0_31] : memref<8x128xf32, #tpu.memory_space<vmem>>, vector<8x128xf32>
      tpu.vector_store %arg5[%c0_30, %c0_31], %50 {strides = array<i32>} : memref<8x128xf32, #tpu.memory_space<vmem>>, vector<8x128xf32>,
    } else {
    }
    return
  }
  func.func @transform_0(%arg0: i32, %arg1: i32) -> (i32, i32) {
    %c0_i32 = arith.constant 0 : i32
    %c0_i32_0 = arith.constant 0 : i32
    return %arg0, %c0_i32 : i32, i32
  }
  func.func @transform_1(%arg0: i32, %arg1: i32) -> (i32, i32) {
    %c0_i32 = arith.constant 0 : i32
    %c0_i32_0 = arith.constant 0 : i32
    return %c0_i32, %arg1 : i32, i32
  }
  func.func @transform_2(%arg0: i32, %arg1: i32) -> (i32, i32) {
    %c0_i32 = arith.constant 0 : i32
    %c0_i32_0 = arith.constant 0 : i32
    return %arg0, %c0_i32 : i32, i32
  }
  func.func @transform_3(%arg0: i32, %arg1: i32) -> (i32, i32) {
    %c0_i32 = arith.constant 0 : i32
    %c0_i32_0 = arith.constant 0 : i32
    return %arg0, %c0_i32 : i32, i32
  }
}

</mosaic_0001>

<llo_original>
// kernel: tpu_custom_call.1
$region0: #{tpu_custom_call.1}
  #allocation0 [shape = 'u32[]', space=smem, size = 0x4, offset = 0x4, fixed_abs, tag = 'smem constant byte address 0x4 - core index']
  #allocation1 [shape = 'u32[144,128]{1,0:T(1,128)}', space=vmem, size = 0x12000, scoped, tag = 'internal scratch']
  #allocation2 [shape = 'f32[8,1]{1,0:T(8,128)}', space=vmem, size = 0x1000, scoped, tag = 'scratch operand']
  #allocation3 [shape = 'f32[8,1]{1,0:T(8,128)}', space=vmem, size = 0x1000, scoped, tag = 'scratch operand']
  #allocation4 [shape = 'f32[8,1]{1,0:T(8,128)}', space=vmem, size = 0x1000, scoped, tag = 'scratch operand']
  %s0 = inlined_call_operand.vmem [shape: bf16[14,32], index: 0, kind: input, shape index: {}]
  %s1 = inlined_call_operand.hbm [shape: bf16[32,384], index: 1, kind: input, shape index: {}]
  %s2 = inlined_call_operand.vmem [shape: s32[14,1], index: 2, kind: input, shape index: {}]
  %s3 = inlined_call_operand.hbm [shape: f32[14,128], index: 3, kind: output, shape index: {}]
  %s4 = sld [smem:[#allocation0]]
  $region57: #{tpu_custom_call.1} parent=0
    _
  %s6 = ssub.s32 1, %s4
  %s7 = scalar_select 0, %s6, %s4
  $region1: #{tpu_custom_call.1} parent=0
    #allocation5 [shape = 'u8[32768]{0}', space=vmem, size = 0x8000, scoped, tag = 'input window, operand 1']
    #allocation6 [shape = 's32[2]{0}', space=sflag, size = 0x8, scoped, tag = 'scoped memory for tpu_custom_call.1']
    #allocation7 [shape = 's32[2]{0}', space=sflag, size = 0x8, scoped, tag = 'scoped memory for tpu_custom_call.1']
    #allocation8 [shape = 'u8[8192]{0}', space=vmem, size = 0x2000, scoped, tag = 'output window, operand 0']
    %8 = vsyncpa [#allocation6], 0
    %s9 = scalar_lea.sflag [#allocation6], 1
    %10 = vsyncpa %s9, 0
    %11 = vsyncpa [#allocation7], 0
    %s12 = scalar_lea.sflag [#allocation7], 1
    %13 = vsyncpa %s12, 0
    loop: start=0, step=1, limit=6
    $region2: #{tpu_custom_call.1} parent=1 // loop_pre_header
      _
    $region3: #{tpu_custom_call.1} parent=1 // loop_header
      %s15 = sphi 0, %s19
      %p16 = scmp.ge.s32.totalorder %s15, 6
      %s22 = sphi 0, %s34
      %s23 = sphi 0, %s30
      %s24 = sphi 0, %s22
      %s25 = sphi 0, %s23
      %s26 = sphi 0, %s24
      %s27 = sphi 0, %s25
      %s37 = sphi 0, %s39
      %s40 = sphi 0, %s37
      %s41 = sphi 0, %s40
      %s57 = sphi 0, %s41
      %s63 = sphi 0, %s65
      %s66 = sphi 0, %s63
      %s67 = sphi 0, %s66
      %s83 = sphi 0, %s67
      %s89 = sphi 0, %s91
      %s92 = sphi 0, %s89
      %s93 = sphi 0, %s92
      %s109 = sphi 0, %s93
      %s115 = sphi 0, %s117
      %s118 = sphi 0, %s115
      %s119 = sphi 0, %s118
      %s135 = sphi 0, %s119
    $region4: #{tpu_custom_call.1} parent=1 // loop_header_branch
      %18 = sbr.rel (%p16) target = $region8
    $region5: #{tpu_custom_call.1} parent=1 // loop_body
      %s20 = ssub.s32 %s15, 1
      %s21 = ssub.s32 %s15, 2
      %s28 = sadd.s32 1, %s23
      %p29 = scmp.ge.s32.totalorder %s28, 2
      %s30 = scalar_select %p29, 0, %s28
      %s31 = sadd.s32 1, %s22
      %s32 = scalar_select %p29, %s31, %s22
      %p33 = scmp.ge.s32.totalorder %s32, 2
      %s34 = scalar_select %p33, 0, %s32
      %s35 = ssub.s32 %s22, %s34
      %p36 = scmp.eq.s32.totalorder %s35, 0
      %s38 = sadd.s32 %s37, 1
      %s39 = scalar_select %p36, %s37, %s38
      %p42 = pneg %p36
      %p43 = scmp.eq.s32.totalorder %s15, 3
      %p44 = por %p42, %p43
      %p45 = scmp.ne.s32.totalorder %s37, %s40
      %p46 = scmp.eq.s32.totalorder %s15, 0
      %p47 = por %p45, %p46
      %p48 = scmp.ne.s32.totalorder %s37, %s40
      %p49 = scmp.eq.s32.totalorder %s20, 3
      %p50 = por %p48, %p49
      %p51 = scmp.ne.s32.totalorder %s40, %s41
      %p52 = scmp.eq.s32.totalorder %s20, 0
      %p53 = por %p51, %p52
      %p54 = scmp.ne.s32.totalorder %s40, %s41
      %p55 = scmp.eq.s32.totalorder %s21, 3
      %p56 = por %p54, %p55
      %p58 = scmp.ne.s32.totalorder %s41, %s57
      %p59 = scmp.eq.s32.totalorder %s21, 0
      %p60 = por %p58, %p59
      %s61 = ssub.s32 %s23, %s30
      %p62 = scmp.eq.s32.totalorder %s61, 0
      %s64 = sadd.s32 %s63, 1
      %s65 = scalar_select %p62, %s63, %s64
      %p68 = pneg %p62
      %p69 = scmp.eq.s32.totalorder %s15, 3
      %p70 = por %p68, %p69
      %p71 = scmp.ne.s32.totalorder %s63, %s66
      %p72 = scmp.eq.s32.totalorder %s15, 0
      %p73 = por %p71, %p72
      %p74 = scmp.ne.s32.totalorder %s63, %s66
      %p75 = scmp.eq.s32.totalorder %s20, 3
      %p76 = por %p74, %p75
      %p77 = scmp.ne.s32.totalorder %s66, %s67
      %p78 = scmp.eq.s32.totalorder %s20, 0
      %p79 = por %p77, %p78
      %p80 = scmp.ne.s32.totalorder %s66, %s67
      %p81 = scmp.eq.s32.totalorder %s21, 3
      %p82 = por %p80, %p81
      %p84 = scmp.ne.s32.totalorder %s67, %s83
      %p85 = scmp.eq.s32.totalorder %s21, 0
      %p86 = por %p84, %p85
      %s87 = ssub.s32 %s22, %s34
      %p88 = scmp.eq.s32.totalorder %s87, 0
      %s90 = sadd.s32 %s89, 1
      %s91 = scalar_select %p88, %s89, %s90
      %p94 = pneg %p88
      %p95 = scmp.eq.s32.totalorder %s15, 3
      %p96 = por %p94, %p95
      %p97 = scmp.ne.s32.totalorder %s89, %s92
      %p98 = scmp.eq.s32.totalorder %s15, 0
      %p99 = por %p97, %p98
      %p100 = scmp.ne.s32.totalorder %s89, %s92
      %p101 = scmp.eq.s32.totalorder %s20, 3
      %p102 = por %p100, %p101
      %p103 = scmp.ne.s32.totalorder %s92, %s93
      %p104 = scmp.eq.s32.totalorder %s20, 0
      %p105 = por %p103, %p104
      %p106 = scmp.ne.s32.totalorder %s92, %s93
      %p107 = scmp.eq.s32.totalorder %s21, 3
      %p108 = por %p106, %p107
      %p110 = scmp.ne.s32.totalorder %s93, %s109
      %p111 = scmp.eq.s32.totalorder %s21, 0
      %p112 = por %p110, %p111
      %s113 = ssub.s32 %s22, %s34
      %p114 = scmp.eq.s32.totalorder %s113, 0
      %s116 = sadd.s32 %s115, 1
      %s117 = scalar_select %p114, %s115, %s116
      %p120 = pneg %p114
      %p121 = scmp.eq.s32.totalorder %s15, 3
      %p122 = por %p120, %p121
      %p123 = scmp.ne.s32.totalorder %s115, %s118
      %p124 = scmp.eq.s32.totalorder %s15, 0
      %p125 = por %p123, %p124
      %p126 = scmp.ne.s32.totalorder %s115, %s118
      %p127 = scmp.eq.s32.totalorder %s20, 3
      %p128 = por %p126, %p127
      %p129 = scmp.ne.s32.totalorder %s118, %s119
      %p130 = scmp.eq.s32.totalorder %s20, 0
      %p131 = por %p129, %p130
      %p132 = scmp.ne.s32.totalorder %s118, %s119
      %p133 = scmp.eq.s32.totalorder %s21, 3
      %p134 = por %p132, %p133
      %p136 = scmp.ne.s32.totalorder %s119, %s135
      %p137 = scmp.eq.s32.totalorder %s21, 0
      %p138 = por %p136, %p137
      %p139 = scmp.le.s32.totalorder 1, %s15
      %p140 = scmp.lt.s32.totalorder %s15, 5
      %p141 = pnand %p139, %p140
      %p142 = pneg %p141
      // Predicated region
      $region9: #{tpu_custom_call.1} parent=5 // pred_check
        _
      $region10: #{tpu_custom_call.1} parent=5 // pred_check_branch
        %144 = sbr.rel (%p141) target = $region12
      $region11: #{tpu_custom_call.1} parent=5 // pred_region
        %s145 = ssub.s32 %s15, 1
      $region12: #{tpu_custom_call.1} parent=5 // pred_fallthru
        _
      %p146 = scmp.lt.s32.totalorder %s15, 4
      // Predicated region
      $region13: #{tpu_custom_call.1} parent=5 // pred_check
        %p147 = pneg %p146
      $region14: #{tpu_custom_call.1} parent=5 // pred_check_branch
        %149 = sbr.rel (%p147) target = $region16
      $region15: #{tpu_custom_call.1} parent=5 // pred_region
        // Predicated region
        $region17: #{tpu_custom_call.1} parent=15 // pred_check
          %p150 = pneg %p47
        $region18: #{tpu_custom_call.1} parent=15 // pred_check_branch
          %152 = sbr.rel (%p150) target = $region20
        $region19: #{tpu_custom_call.1} parent=15 // pred_region
          %p153 = scmp.lt.s32.totalorder %s22, 1
          %s154 = scalar_select %p153, %s22, 1
          %s155 = smul.addr %s154, 4
          %s156 = scalar_lea.vmem %s0, %s155
        $region20: #{tpu_custom_call.1} parent=15 // pred_fallthru
          _
        // Predicated region
        $region21: #{tpu_custom_call.1} parent=15 // pred_check
          %p157 = pneg %p73
        $region22: #{tpu_custom_call.1} parent=15 // pred_check_branch
          %159 = sbr.rel (%p157) target = $region24
        $region23: #{tpu_custom_call.1} parent=15 // pred_region
          %s160 = sand.u32 %s63, 1
          %s161 = scalar_lea.sflag [#allocation6], %s160
          %s162 = sand.u32 %s63, 1
          %s163 = smul.addr %s162, 32
          %s164 = scalar_lea.vmem [#allocation5], %s163
          %s165 = smul.u32 2, %s23
          %s166 = ssub.s32 3, %s165
          %p167 = scmp.lt.s32.totalorder %s166, 2
          %s168 = scalar_select %p167, %s166, 2
          %s169 = smul.u32 256, %s168
          %s171 = ssub.s32 512, %s169
          %172 = vsyncadd %s161, %s171
          %p173 = scmp.ne.s32.totalorder 0, %s169
          %s174 = smul.addr %s165, 64
          %s175 = scalar_lea.hbm %s1, %s174
          %s176 = smul.u32 %s168, 4
          %s177 = smul.u32 %s176, 4
          %s178 = sshll.u32 %s164, 4
          %s179 = int_to_ptr.vmem [resolvable:$true] %s178
          %s180 = sshll.u32 %s177, 4
          %184 = dma.hbm_to_vmem [thread:$0]  (%p173), %s175, %s180, %s179, %s161, 192, 128, %s176
        $region24: #{tpu_custom_call.1} parent=15 // pred_fallthru
          _
        // Predicated region
        $region25: #{tpu_custom_call.1} parent=15 // pred_check
          %p185 = pneg %p99
        $region26: #{tpu_custom_call.1} parent=15 // pred_check_branch
          %187 = sbr.rel (%p185) target = $region28
        $region27: #{tpu_custom_call.1} parent=15 // pred_region
          %p188 = scmp.lt.s32.totalorder %s22, 1
          %s189 = scalar_select %p188, %s22, 1
          %s190 = smul.addr %s189, 8
          %s191 = scalar_lea.vmem %s2, %s190
        $region28: #{tpu_custom_call.1} parent=15 // pred_fallthru
          _
      $region16: #{tpu_custom_call.1} parent=5 // pred_fallthru
        _
      %p192 = scmp.le.s32.totalorder 1, %s15
      %p193 = scmp.lt.s32.totalorder %s15, 5
      %p194 = pnand %p192, %p193
      %p195 = pneg %p194
      // Predicated region
      $region29: #{tpu_custom_call.1} parent=5 // pred_check
        _
      $region30: #{tpu_custom_call.1} parent=5 // pred_check_branch
        %197 = sbr.rel (%p194) target = $region32
      $region31: #{tpu_custom_call.1} parent=5 // pred_region
        %s198 = ssub.s32 %s15, 1
        %s199 = sand.u32 %s66, 1
        %s200 = scalar_lea.sflag [#allocation6], %s199
        %s201 = sand.u32 %s66, 1
        %s202 = smul.addr %s201, 32
        %s203 = scalar_lea.vmem [#allocation5], %s202
        // Predicated region
        $region33: #{tpu_custom_call.1} parent=31 // pred_check
          %p204 = pneg %p79
        $region34: #{tpu_custom_call.1} parent=31 // pred_check_branch
          %206 = sbr.rel (%p204) target = $region36
        $region35: #{tpu_custom_call.1} parent=31 // pred_region
          %207 = dma.done %s200, 512
        $region36: #{tpu_custom_call.1} parent=31 // pred_fallthru
          _
        %p208 = scmp.lt.s32.totalorder %s24, 1
        %s209 = scalar_select %p208, %s24, 1
        %s210 = smul.addr %s209, 4
        %s211 = scalar_lea.vmem %s0, %s210
        %p212 = pneg %p53
        %p213 = pneg %p50
        %s214 = sand.u32 %s66, 1
        %s215 = scalar_lea.sflag [#allocation6], %s214
        %s216 = sand.u32 %s66, 1
        %s217 = smul.addr %s216, 32
        %s218 = scalar_lea.vmem [#allocation5], %s217
        %p219 = pneg %p79
        %p220 = pneg %p76
        %p221 = scmp.lt.s32.totalorder %s24, 1
        %s222 = scalar_select %p221, %s24, 1
        %s223 = smul.addr %s222, 8
        %s224 = scalar_lea.vmem %s2, %s223
        %p225 = pneg %p105
        %p226 = pneg %p102
        %p227 = pneg %p131
        %p228 = pneg %p128
        %s229 = sand.u32 %s118, 1
        %s230 = scalar_lea.sflag [#allocation7], %s229
        %s231 = sand.u32 %s118, 1
        %s232 = smul.addr %s231, 8
        %s233 = scalar_lea.vmem [#allocation8], %s232
        %p234 = scmp.lt.s32.totalorder %s24, 1
        %s235 = scalar_select %p234, %s24, 1
        %s236 = smul.addr %s235, 4
        %s237 = scalar_lea.vmem %s0, %s236
        %s238 = smul.u32 2, %s25
        %s239 = ssub.s32 3, %s238
        %p240 = scmp.lt.s32.totalorder %s239, 2
        %s241 = scalar_select %p240, %s239, 2
        %s242 = smul.u32 256, %s241
        %p243 = scmp.lt.s32.totalorder %s24, 1
        %s244 = scalar_select %p243, %s24, 1
        %s245 = smul.addr %s244, 8
        %s246 = scalar_lea.vmem %s2, %s245
        %p248 = scmp.eq.s32.totalorder %s25, 0
        // Predicated region
        $region37: #{tpu_custom_call.1} parent=31 // pred_check
          %p249 = pneg %p248
        $region38: #{tpu_custom_call.1} parent=31 // pred_check_branch
          %251 = sbr.rel (%p249) target = $region40
        $region39: #{tpu_custom_call.1} parent=31 // pred_region
          %vm252 = vcmask 7168
          %253 = vst.msk [vmem:[#allocation2] sm:$0xff] %vm252, -inf
          %254 = vst.msk [vmem:[#allocation3] sm:$0xff] %vm252, 0.0
          %255 = vst.msk [vmem:[#allocation4] sm:$0xff] %vm252, 0.0
        $region40: #{tpu_custom_call.1} parent=31 // pred_fallthru
          _
        %v256 = vld [vmem:[%s237] sm:$0xf]
        %v257 = vld [vmem:[%s203] sm:$0xff]
        %v258 = vld [vmem:[%s203 + $0x8] sm:$0xff]
        %v259 = vld [vmem:[%s203 + $0x10] sm:$0xff]
        %v260 = vld [vmem:[%s203 + $0x18] sm:$0xff]
        %v265 = vunpack.c.l.b16 %v257
        %v266 = vunpack.c.h.b16 %v257
        %v267 = vunpack.c.l.b16 %v258
        %v268 = vunpack.c.h.b16 %v258
        %v269 = vunpack.c.l.b16 %v259
        %v270 = vunpack.c.h.b16 %v259
        %v271 = vunpack.c.l.b16 %v260
        %v272 = vunpack.c.h.b16 %v260
        %v273 = vpack.c.b16 %v267, %v265
        %v274 = vpack.c.b16 %v268, %v266
        %v275 = vpack.c.b16 %v271, %v269
        %v276 = vpack.c.b16 %v272, %v270
        %vm281 = vcmask 261120
        %v283 = vsel %vm281, %v256, 0
        %285 = vmatprep.subr.bf16.mxu0 %v274
        %286 = vmatpush1.bf16.msra.mxu0 %v273
        %287 = vmatprep.subr.bf16.mxu0 %v276
        %288 = vmatpush1.bf16.msra.mxu0 %v275
        %289 = vmatprep.subr.bf16.mxu0 0
        %290 = vmatpush1.bf16.msra.mxu0 0
        %291 = vmatprep.subr.bf16.mxu0 0
        %292 = vmatpush1.bf16.msra.mxu0 0
        %293 = vmatprep.subr.bf16.mxu0 0
        %294 = vmatpush1.bf16.msra.mxu0 0
        %295 = vmatprep.subr.bf16.mxu0 0
        %296 = vmatpush1.bf16.msra.mxu0 0
        %297 = vmatprep.subr.bf16.mxu0 0
        %298 = vmatpush1.bf16.msra.mxu0 0
        %299 = vmatprep.subr.bf16.mxu0 0
        %300 = vmatpush1.bf16.msra.mxu0 0
        %301 = vmatprep.subr.bf16.mxu0 0
        %302 = vmatpush1.bf16.msra.mxu0 0
        %303 = vmatprep.subr.bf16.mxu0 0
        %304 = vmatpush1.bf16.msra.mxu0 0
        %305 = vmatprep.subr.bf16.mxu0 0
        %306 = vmatpush1.bf16.msra.mxu0 0
        %307 = vmatprep.subr.bf16.mxu0 0
        %308 = vmatpush1.bf16.msra.mxu0 0
        %309 = vmatprep.subr.bf16.mxu0 0
        %310 = vmatpush1.bf16.msra.mxu0 0
        %311 = vmatprep.subr.bf16.mxu0 0
        %312 = vmatpush1.bf16.msra.mxu0 0
        %313 = vmatprep.subr.bf16.mxu0 0
        %314 = vmatpush1.bf16.msra.mxu0 0
        %315 = vmatprep.subr.bf16.mxu0 0
        %316 = vmatpush1.bf16.msra.mxu0 0
        %317 = vmatprep.mubr.bf16.mxu0 0
        %318 = vmatmul.mubr.bf16.gmra.mrb[0].mxu0 %v283
        %v319 = vpop.f32.mrb[0].mxu0
        %v320 = vadd.f32 0.0, %v319
        %v321 = vpop.f32.mrb[0].mxu0
        %v322 = vadd.f32 0.0, %v321
        %v323 = vpop.f32.mrb[0].mxu0
        %v324 = vpop.f32.mrb[0].mxu0
        %325 = vdwg.mxu0
        %v326 = vlaneseq
        %v327 = vand.u32 %v326, 127
        %v328 = vadd.s32 %v327, 128
        %s329 = smul.u32 %s25, 256
        %v330 = vstv %s329
        %v331 = vadd.s32 %v327, %v330
        %v332 = vadd.s32 %v328, %v330
        %vm333 = vcmp.lt.s32.totalorder %v331, 384
        %vm334 = vcmp.lt.s32.totalorder %v332, 384
        %v335 = vsel %vm333, %v320, -inf
        %v336 = vsel %vm334, %v322, -inf
        %v337 = vld [vmem:[#allocation4] sm:$0xff]
        %v338 = vld [vmem:[%s246] sm:$0xff]
        %339 = vset.pattern.permute.xlu0 0
        %340 = vperm.xlu0 %339, %v338
        %v341 = vpop.permute.xlu0 %340
        %vm342 = vcmp.eq.s32.totalorder %v331, %v341
        %vm343 = vcmp.eq.s32.totalorder %v332, %v341
        %v344 = vsel %vm342, %v335, 0.0
        %v345 = vsel %vm343, %v336, 0.0
        %v346 = vadd.f32 %v344, %v345
        %347 = vadd.xlane.f32.xlu0 %v346
        %v348 = vpop.xlane.xlu0 %347
        %v349 = vadd.f32 %v337, %v348
        %vm350 = vcmask 7168
        %351 = vst.msk [vmem:[#allocation4] sm:$0xff] %vm350, %v349
        %v352 = vld [vmem:[#allocation2] sm:$0xff]
        %v353 = vmax.f32 %v335, %v336
        %354 = vmax.xlane.f32.xlu0 %v353
        %v355 = vpop.xlane.xlu0 %354
        %v356 = vmax.f32 %v352, %v355
        %v357 = vsub.f32 %v352, %v356
        %v358 = vmul.f32 %v357, 1.442695
        %v359 = vpow.pop %v358
        %v360 = vld [vmem:[#allocation3] sm:$0xff]
        %v361 = vmul.f32 %v359, %v360
        %363 = vset.pattern.permute.xlu0 0
        %364 = vperm.xlu0 %363, %v356
        %v365 = vpop.permute.xlu0 %364
        %v367 = vsub.f32 %v335, %v365
        %v368 = vsub.f32 %v336, %v365
        %v369 = vmul.f32 %v367, 1.442695
        %v370 = vpow.pop %v369
        %v371 = vmul.f32 %v368, 1.442695
        %v372 = vpow.pop %v371
        %v373 = vadd.f32 %v370, %v372
        %374 = vadd.xlane.f32.xlu0 %v373
        %v375 = vpop.xlane.xlu0 %374
        %v376 = vadd.f32 %v361, %v375
        %377 = vst.msk [vmem:[#allocation3] sm:$0xff] %vm350, %v376
        %378 = vst.msk [vmem:[#allocation2] sm:$0xff] %vm350, %v356
        %p379 = scmp.eq.s32.totalorder %s25, 1
        // Predicated region
        $region41: #{tpu_custom_call.1} parent=31 // pred_check
          %p380 = pneg %p379
        $region42: #{tpu_custom_call.1} parent=31 // pred_check_branch
          %382 = sbr.rel (%p380) target = $region44
        $region43: #{tpu_custom_call.1} parent=31 // pred_region
          %v383 = vld [vmem:[#allocation4] sm:$0xff]
          %v384 = vld [vmem:[#allocation2] sm:$0xff]
          %v385 = vld [vmem:[#allocation3] sm:$0xff]
          %v386 = vlog2.pop %v385
          %v387 = vmul.f32 %v386, 0.6931472
          %v388 = vadd.f32 %v384, %v387
          %v389 = vsub.f32 %v383, %v388
          %391 = vset.pattern.permute.xlu0 0
          %392 = vperm.xlu0 %391, %v389
          %v393 = vpop.permute.xlu0 %392
          %395 = vst [vmem:[%s233] sm:$0xff] %v393
        $region44: #{tpu_custom_call.1} parent=31 // pred_fallthru
          _
        %s396 = sand.u32 %s118, 1
        %s397 = scalar_lea.sflag [#allocation7], %s396
        %s398 = sand.u32 %s118, 1
        %s399 = smul.addr %s398, 8
        %s400 = scalar_lea.vmem [#allocation8], %s399
        // Predicated region
        $region45: #{tpu_custom_call.1} parent=31 // pred_check
          %p401 = pneg %p128
        $region46: #{tpu_custom_call.1} parent=31 // pred_check_branch
          %403 = sbr.rel (%p401) target = $region48
        $region47: #{tpu_custom_call.1} parent=31 // pred_region
          %s405 = ssub.s32 128, 128
          %406 = vsyncadd %s397, %s405
          %s407 = smul.addr %s24, 128
          %s408 = scalar_lea.hbm %s3, %s407
          %s410 = sshll.u32 %s400, 4
          %s411 = int_to_ptr.vmem [resolvable:$true] %s410
          %413 = dma.vmem_to_hbm [thread:$0]  %s411, 128, %s408, %s397
        $region48: #{tpu_custom_call.1} parent=31 // pred_fallthru
          _
      $region32: #{tpu_custom_call.1} parent=5 // pred_fallthru
        _
      %p414 = scmp.le.s32.totalorder 2, %s15
      // Predicated region
      $region49: #{tpu_custom_call.1} parent=5 // pred_check
        %p415 = pneg %p414
      $region50: #{tpu_custom_call.1} parent=5 // pred_check_branch
        %417 = sbr.rel (%p415) target = $region52
      $region51: #{tpu_custom_call.1} parent=5 // pred_region
        %s418 = ssub.s32 %s15, 2
        // Predicated region
        $region53: #{tpu_custom_call.1} parent=51 // pred_check
          %p419 = pneg %p134
        $region54: #{tpu_custom_call.1} parent=51 // pred_check_branch
          %421 = sbr.rel (%p419) target = $region56
        $region55: #{tpu_custom_call.1} parent=51 // pred_region
          %s422 = sand.u32 %s119, 1
          %s423 = scalar_lea.sflag [#allocation7], %s422
          %s424 = sand.u32 %s119, 1
          %s425 = smul.addr %s424, 8
          %s426 = scalar_lea.vmem [#allocation8], %s425
          %427 = dma.done %s423, 128
        $region56: #{tpu_custom_call.1} parent=51 // pred_fallthru
          _
      $region52: #{tpu_custom_call.1} parent=5 // pred_fallthru
        _
    $region6: #{tpu_custom_call.1} parent=1 // loop_footer
      %s19 = sadd.s32 1, %s15
    $region7: #{tpu_custom_call.1} parent=1 // loop_footer_branch
      %14 = sbr.rel target = $region3
    $region8: #{tpu_custom_call.1} parent=1 // loop_exit
      _
    %428 = vsyncpa [#allocation6], 1
    %s429 = scalar_lea.sflag [#allocation6], 1
    %430 = vsyncpa %s429, 1
    %431 = vsyncpa [#allocation7], 1
    %s432 = scalar_lea.sflag [#allocation7], 1
    %433 = vsyncpa %s432, 1

</llo_original>
